<compile_context>
chip_gen: v7x
topology: tpu7x:2x2x1
jax: 0.10.0
libtpu: 0.0.40
codegen_flags: <defaults>
</compile_context>

<pallas_src>
import numpy as np
import jax
import jax.numpy as jnp
from jax.experimental import pallas as pl
from jax.experimental.pallas import tpu as pltpu


def _make_fourier_kernel(D: int, F: int, include_input: bool):
    """Kernel: x_ref (D, TN) channel-first block -> o_ref (TN, out_dims) channel-last block."""
    DF = D * F
    half_pi = float(0.5 * np.pi)

    def kernel(x_ref, o_ref):
        tn = x_ref.shape[1]                              # static lane-tile size
        xt = x_ref[...].astype(jnp.float32)              # (D, TN), N on lanes (dense)

        # Rows of x repeated F times, d-major / f-minor: row d*F+f -> x[d].
        x_rep = jnp.concatenate(
            [jnp.broadcast_to(xt[d:d + 1, :], (F, tn)) for d in range(D)],
            axis=0)                                      # (DF, TN)

        # Scale column 2**(row % F), built in-kernel (no captured array consts);
        # integer shift keeps the powers of two exact.
        r = jax.lax.broadcasted_iota(jnp.int32, (DF, 1), 0)
        scale = jnp.left_shift(jnp.int32(1), r % F).astype(jnp.float32)   # (DF, 1)

        xb = x_rep * scale                               # (DF, TN)
        sin_xb = jnp.sin(xb)                             # dense 12-row EUP passes
        cos_xb = jnp.sin(xb + half_pi)                   # same expression as the reference

        parts = ([xt] if include_input else []) + [sin_xb, cos_xb]
        slab = jnp.concatenate(parts, axis=0)            # (out_dims, TN)

        # Single transpose (XLU) + single full-tile store: output is already in
        # the module's channel-last layout, so no HBM transpose after the call.
        o_ref[...] = slab.T.astype(o_ref.dtype)          # (TN, out_dims)

    return kernel


def fourier_embedding(x, num_frequencies: int = 4, include_input: bool = True,
                      max_tile_lanes: int = 16384, out_dtype=jnp.float32):
    """Pallas implementation of FourierEmbedding.forward.

    x: array of shape (..., input_dim). Returns `out_dtype` array (..., out_dims).
    """
    x = jnp.asarray(x)
    *lead, D = x.shape
    lead = tuple(lead)
    F = int(num_frequencies)
    out_dims = (D if include_input else 0) + (2 * F * D if F >= 1 else 0)

    # Degenerate cases: no kernel needed (also guards out_dims == 0 / empty input).
    if F < 1:
        xf = x.astype(out_dtype)
        return xf if include_input else jnp.zeros((*lead, 0), out_dtype)
    N = int(np.prod(lead)) if lead else 1
    if N == 0:
        return jnp.zeros((*lead, out_dims), out_dtype)

    # Channel-first input for lane-dense compute. This small transpose
    # (~24N bytes) is kept in the wrapper; the expensive output transpose
    # (~216N bytes) is eliminated by writing channel-last from the kernel.
    xT = x.reshape(N, D).T                               # (D, N)

    # Lane-tile selection:
    #   N <= 128            : single full block (any N allowed).
    #   otherwise           : multiple-of-128 tile, sized so the grid has
    #                         >= ~8 steps when N permits (TC sharding /
    #                         pipelining on v7x), capped by max_tile_lanes.
    #   Ragged last block is handled by cdiv (padded loads, masked writeback).
    if N <= 128:
        TN = N
    else:
        target = -(-N // 8)                              # ceil(N / 8)
        TN = max(128, min(max_tile_lanes, ((target + 127) // 128) * 128))
    grid = (pl.cdiv(N, TN),)

    kernel = _make_fourier_kernel(D, F, include_input)

    out = pl.pallas_call(
        kernel,
        out_shape=jax.ShapeDtypeStruct((N, out_dims), out_dtype),
        grid=grid,
        in_specs=[pl.BlockSpec((D, TN), lambda i: (0, i))],
        out_specs=pl.BlockSpec((TN, out_dims), lambda i: (i, 0)),
        compiler_params=pltpu.CompilerParams(
            dimension_semantics=("parallel",),
            # ~10 MB/step at TN=16384 incl. intermediates; explicit limit keeps
            # v5e (16 MiB scoped default) safe and leaves headroom everywhere.
            vmem_limit_bytes=32 * 1024 * 1024),
    )(xT)

    # Output is already channel-last: plain reshape, no HBM transpose.
    return out.reshape(*lead, out_dims)


def fourier_embedding_ref(x, num_frequencies: int = 4, include_input: bool = True):
    """Pure-JAX reference mirroring the PyTorch forward exactly."""
    x = jnp.asarray(x, jnp.float32)
    *lead, D = x.shape
    F = num_frequencies
    scales = jnp.asarray((2.0 ** np.linspace(0.0, F - 1, F)).astype(np.float32))
    xb = (x[..., None] * scales).reshape(*lead, F * D)
    four_feat = jnp.sin(jnp.concatenate([xb, xb + 0.5 * jnp.pi], axis=-1))
    ret = [x] if include_input else []
    return jnp.concatenate(ret + [four_feat], axis=-1)


if __name__ == "__main__":
    key = jax.random.PRNGKey(0)
    # Shapes consistent with the module: points with input_dim=3, num_frequencies=4
    # -> out_dims = 3 + 2*4*3 = 27.
    batch, seq, input_dim, num_freq = 2, 64, 3, 4
    x = jax.random.normal(key, (batch, seq, input_dim), dtype=jnp.float32)

    out = jax.block_until_ready(
        fourier_embedding(x, num_frequencies=num_freq, include_input=True))
    ref = fourier_embedding_ref(x, num_frequencies=num_freq, include_input=True)
    assert out.shape == (batch, seq, input_dim + 2 * num_freq * input_dim)
    np.testing.assert_allclose(np.asarray(out), np.asarray(ref), atol=1e-5, rtol=1e-5)

    # Multi-step grid with a ragged last block (N=600 -> TN=128, grid=5).
    x2 = jax.random.normal(jax.random.PRNGKey(1), (600, input_dim), dtype=jnp.float32)
    out2 = jax.block_until_ready(fourier_embedding(x2, num_frequencies=num_freq))
    ref2 = fourier_embedding_ref(x2, num_frequencies=num_freq)
    np.testing.assert_allclose(np.asarray(out2), np.asarray(ref2), atol=1e-5, rtol=1e-5)

    # Small row count not a multiple of 8/128 exercises the single full-block path.
    x3 = jax.random.normal(jax.random.PRNGKey(2), (2, 37, input_dim), dtype=jnp.float32)
    out3 = jax.block_until_ready(fourier_embedding(x3, num_frequencies=num_freq))
    ref3 = fourier_embedding_ref(x3, num_frequencies=num_freq)
    np.testing.assert_allclose(np.asarray(out3), np.asarray(ref3), atol=1e-5, rtol=1e-5)

    print("KERNEL_OK")
</pallas_src>

<mosaic_0001>
module attributes {stable_mosaic.version = 11 : i64} {
  func.func @kernel(%arg0: i32, %arg1: memref<3x128xf32, #tpu.memory_space<vmem>>, %arg2: memref<128x27xf32, #tpu.memory_space<vmem>>) attributes {dimension_semantics = [#tpu.dimension_semantics<parallel>], iteration_bounds = array<i64: 1>, scalar_prefetch = 0 : i64, scratch_operands = 0 : i64, tpu.core_type = #tpu.core_type<tc>, window_params = [{transform_indices = @transform_0, window_bounds = array<i64: 3, 128>}, {transform_indices = @transform_1, window_bounds = array<i64: 128, 27>}]} {
    %c0 = arith.constant 0 : index
    %c0_0 = arith.constant 0 : index
    %0 = vector.load %arg1[%c0, %c0_0] : memref<3x128xf32, #tpu.memory_space<vmem>>, vector<3x128xf32>
    %1 = vector.extract_strided_slice %0 {offsets = [0, 0], sizes = [1, 128], strides = [1, 1]} : vector<3x128xf32> to vector<1x128xf32>
    %2 = vector.shape_cast %1 : vector<1x128xf32> to vector<1x128xf32>
    %3 = vector.broadcast %2 : vector<1x128xf32> to vector<4x128xf32>
    %4 = vector.extract_strided_slice %0 {offsets = [1, 0], sizes = [1, 128], strides = [1, 1]} : vector<3x128xf32> to vector<1x128xf32>
    %5 = vector.shape_cast %4 : vector<1x128xf32> to vector<1x128xf32>
    %6 = vector.broadcast %5 : vector<1x128xf32> to vector<4x128xf32>
    %7 = vector.extract_strided_slice %0 {offsets = [2, 0], sizes = [1, 128], strides = [1, 1]} : vector<3x128xf32> to vector<1x128xf32>
    %8 = vector.shape_cast %7 : vector<1x128xf32> to vector<1x128xf32>
    %9 = vector.broadcast %8 : vector<1x128xf32> to vector<4x128xf32>
    %10 = tpu.concatenate %3, %6, %9 in 0 : vector<4x128xf32>, vector<4x128xf32>, vector<4x128xf32> -> vector<12x128xf32>
    %11 = tpu.iota {dimensions = array<i32: 0>} : vector<12x1xi32>
    %c4_i32 = arith.constant 4 : i32
    %c0_i32 = arith.constant 0 : i32
    %12 = arith.cmpi eq, %c4_i32, %c0_i32 : i32
    %c1_i32 = arith.constant 1 : i32
    %13 = arith.select %12, %c1_i32, %c4_i32 : i32
    %14 = vector.broadcast %13 : i32 to vector<12x1xi32>
    %15 = arith.remsi %11, %14 : vector<12x1xi32>
    %c0_i32_1 = arith.constant 0 : i32
    %16 = vector.broadcast %c0_i32_1 : i32 to vector<12x1xi32>
    %17 = arith.cmpi ne, %15, %16 : vector<12x1xi32>
    %c0_i32_2 = arith.constant 0 : i32
    %18 = vector.broadcast %c0_i32_2 : i32 to vector<12x1xi32>
    %19 = arith.cmpi slt, %15, %18 : vector<12x1xi32>
    %c0_i32_3 = arith.constant 0 : i32
    %20 = arith.cmpi slt, %13, %c0_i32_3 : i32
    %21 = vector.broadcast %20 : i1 to vector<12x1xi1>
    %22 = vector.broadcast %21 : vector<12x1xi1> to vector<12x1xi1>
    %23 = arith.xori %19, %22 : vector<12x1xi1>
    %24 = arith.andi %23, %17 : vector<12x1xi1>
    %25 = vector.broadcast %13 : i32 to vector<12x1xi32>
    %26 = arith.addi %15, %25 : vector<12x1xi32>
    %27 = arith.select %24, %26, %15 : vector<12x1xi1>, vector<12x1xi32>
    %c1_i32_4 = arith.constant 1 : i32
    %28 = vector.broadcast %c1_i32_4 : i32 to vector<12x1xi32>
    %29 = arith.shli %28, %27 : vector<12x1xi32>
    %30 = arith.sitofp %29 : vector<12x1xi32> to vector<12x1xf32>
    %31 = vector.broadcast %30 : vector<12x1xf32> to vector<12x128xf32>
    %32 = arith.mulf %10, %31 : vector<12x128xf32>
    %33 = math.sin %32 : vector<12x128xf32>
    %cst = arith.constant 1.57079637 : f32
    %34 = vector.broadcast %cst : f32 to vector<12x128xf32>
    %35 = arith.addf %32, %34 : vector<12x128xf32>
    %36 = math.sin %35 : vector<12x128xf32>
    %37 = tpu.concatenate %0, %33, %36 in 0 : vector<3x128xf32>, vector<12x128xf32>, vector<12x128xf32> -> vector<27x128xf32>
    %38 = tpu.transpose %37, [1, 0] : vector<27x128xf32> -> vector<128x27xf32>
    %c0_5 = arith.constant 0 : index
    %c0_6 = arith.constant 0 : index
    %39 = vector.load %arg2[%c0_5, %c0_6] : memref<128x27xf32, #tpu.memory_space<vmem>>, vector<128x27xf32>
    tpu.vector_store %arg2[%c0_5, %c0_6], %38 {strides = array<i32>} : memref<128x27xf32, #tpu.memory_space<vmem>>, vector<128x27xf32>,
    return
  }
  func.func @transform_0(%arg0: i32) -> (i32, i32) {
    %c0_i32 = arith.constant 0 : i32
    %c0_i32_0 = arith.constant 0 : i32
    return %c0_i32, %arg0 : i32, i32
  }
  func.func @transform_1(%arg0: i32) -> (i32, i32) {
    %c0_i32 = arith.constant 0 : i32
    %c0_i32_0 = arith.constant 0 : i32
    return %arg0, %c0_i32 : i32, i32
  }
}

</mosaic_0001>

<llo_original>
// kernel: tpu_custom_call.1
$region0: #{tpu_custom_call.1}
  #allocation0 [shape = 'u32[]', space=smem, size = 0x4, offset = 0x4, fixed_abs, tag = 'smem constant byte address 0x4 - core index']
  #allocation1 [shape = 'u32[144,128]{1,0:T(1,128)}', space=vmem, size = 0x12000, scoped, tag = 'internal scratch']
  %s0 = inlined_call_operand.hbm [shape: f32[3,128], index: 0, kind: input, shape index: {}]
  %s1 = inlined_call_operand.vmem [shape: f32[128,27], index: 1, kind: output, shape index: {}]
  %s2 = sld [smem:[#allocation0]]
  $region18: #{tpu_custom_call.1} parent=0
    _
  %s4 = ssub.s32 1, %s2
  %s5 = scalar_select 0, %s4, %s2
  $region1: #{tpu_custom_call.1} parent=0
    #allocation2 [shape = 'u8[2048]{0}', space=vmem, size = 0x800, scoped, tag = 'input window, operand 0, single buffered']
    #allocation3 [shape = 's32[1]{0}', space=sflag, size = 0x4, scoped, tag = 'scoped memory for tpu_custom_call.1']
    %6 = vsyncpa [#allocation3], 0
    // Predicated region
    $region2: #{tpu_custom_call.1} parent=1 // pred_check
      _
    $region3: #{tpu_custom_call.1} parent=1 // pred_check_branch
      %8 = sbr.rel (0) target = $region5
    $region4: #{tpu_custom_call.1} parent=1 // pred_region
      %s10 = ssub.s32 64, 64
      %11 = vsyncadd [#allocation3], %s10
      %s13 = sshll.u32 [#allocation2], 4
      %s14 = int_to_ptr.vmem [resolvable:$true] %s13
      %16 = dma.hbm_to_vmem [thread:$0]  %s0, 64, %s14, [#allocation3]
    $region5: #{tpu_custom_call.1} parent=1 // pred_fallthru
      _
    // Predicated region
    $region6: #{tpu_custom_call.1} parent=1 // pred_check
      _
    $region7: #{tpu_custom_call.1} parent=1 // pred_check_branch
      %18 = sbr.rel (0) target = $region9
    $region8: #{tpu_custom_call.1} parent=1 // pred_region
      %19 = dma.done [#allocation3], 64
    $region9: #{tpu_custom_call.1} parent=1 // pred_fallthru
      _
    %v20 = vld [vmem:[#allocation2] sm:$0x7]
    %v21 = vlaneseq
    %v22 = vshrl.u32 %v21, 7
    %v23 = vsub.s32 0, %v22
    %v24 = vrot.slane %v20, %v23
    %v25 = vlaneseq
    %v26 = vshrl.u32 %v25, 7
    %v27 = vsub.s32 1, %v26
    %v28 = vrot.slane %v20, %v27
    %v29 = vlaneseq
    %v30 = vshrl.u32 %v29, 7
    %v31 = vsub.s32 2, %v30
    %v32 = vrot.slane %v20, %v31
    %vm33 = vcmask 1043456
    %v34 = vsel %vm33, %v24, %v28
    %v35 = vlaneseq
    %v36 = vshrl.u32 %v35, 7
    %v37 = vadd.s32 %v36, 8
    %vm38 = vcmp.lt.s32.totalorder %v36, 0
    %v39 = vsub.s32 0, %v36
    %v40 = vsel %vm38, %v39, %v36
    %v41 = vshrl.u32 %v40, 2
    %v42 = vand.u32 %v40, 3
    %v43 = vsub.s32 0, %v42
    %v44 = vsel %vm38, %v43, %v42
    %vm45 = vcmp.lt.s32.totalorder %v37, 0
    %v46 = vsub.s32 0, %v37
    %v47 = vsel %vm45, %v46, %v37
    %v48 = vshrl.u32 %v47, 2
    %v49 = vand.u32 %v47, 3
    %v50 = vsub.s32 0, %v49
    %v51 = vsel %vm45, %v50, %v49
    %vm52 = vcmp.ne.s32.totalorder %v44, 0
    %vm53 = vcmp.ne.s32.totalorder %v51, 0
    %vm54 = vcmp.lt.s32.totalorder %v44, 0
    %vm55 = vcmp.lt.s32.totalorder %v51, 0
    %vm56 = vmand %vm54, %vm52
    %vm57 = vmand %vm55, %vm53
    %v58 = vadd.s32 %v44, 4
    %v59 = vadd.s32 %v51, 4
    %v60 = vsel %vm56, %v58, %v44
    %v61 = vsel %vm57, %v59, %v51
    %v62 = vshll.u32 1, %v60
    %v63 = vshll.u32 1, %v61
    %v64 = vcvt.s32.f32 %v62
    %v65 = vcvt.s32.f32 %v63
    %v66 = vmul.f32 %v34, %v64
    %v67 = vmul.f32 %v32, %v65
    %v68 = vand.u32 2147483647, %v66
    %vm69 = vcmp.le.f32.partialorder %v68, 0.7853982
    %vm70 = vcmp.lt.s32.totalorder %v66, 0
    %v71 = vand.u32 %v66, 2139095040
    %v72 = vshrl.u32 %v71, 23
    %v73 = vsub.s32 %v72, 127
    %v74 = vand.u32 2147483647, %v66
    %v75 = vand.u32 %v74, 8388607
    %v76 = vor.u32 %v75, 8388608
    %v77 = vsub.s32 0, %v76
    %v78 = vadd.s32 %v73, 1
    %vm79 = vcmp.gt.s32.totalorder %v78, 0
    %v80 = vsel %vm79, %v78, 0
    %v81 = vshrl.u32 %v80, 5
    %v82 = vand.u32 %v80, 31
    %v83 = vsub.s32 32, %v82
    %v84 = vshrl.u32 683565275, %v83
    %v85 = vshll.u32 683565275, %v82
    %v86 = vshrl.u32 2475754826, %v83
    %v87 = vor.u32 %v85, %v86
    %v88 = vshll.u32 2475754826, %v82
    %v89 = vshrl.u32 2131351028, %v83
    %v90 = vor.u32 %v88, %v89
    %v91 = vshll.u32 2131351028, %v82
    %v92 = vshrl.u32 2102212464, %v83
    %v93 = vor.u32 %v91, %v92
    %v94 = vshll.u32 2102212464, %v82
    %v95 = vshrl.u32 920167782, %v83
    %v96 = vor.u32 %v94, %v95
    %v97 = vshll.u32 920167782, %v82
    %v98 = vshrl.u32 1326507024, %v83
    %v99 = vor.u32 %v97, %v98
    %vm100 = vcmp.lt.s32.totalorder %v81, 1
    %vm101 = vcmp.lt.s32.totalorder %v81, 2
    %vm102 = vcmp.lt.s32.totalorder %v81, 3
    %vm103 = vcmp.lt.s32.totalorder %v81, 4
    %v104 = vsel %vm100, %v84, %v87
    %v105 = vsel %vm103, %v93, 2102212464
    %v106 = vsel %vm102, %v90, %v105
    %v107 = vsel %vm101, %v104, %v106
    %v108 = vsel %vm100, %v87, %v90
    %v109 = vsel %vm103, %v96, 920167782
    %v110 = vsel %vm102, %v93, %v109
    %v111 = vsel %vm101, %v108, %v110
    %v112 = vsel %vm100, %v90, %v93
    %v113 = vsel %vm103, %v99, 1326507024
    %v114 = vsel %vm102, %v96, %v113
    %v115 = vsel %vm101, %v112, %v114
    %v116 = vshll.u32 %v76, 8
    %v117 = vmul.u32.u64.compose %v116, %v115
    %v118 = vextract.low.u32 %v117
    %v119 = vextract.high.u32 %v117
    %v120 = vmul.u32.u64.compose %v116, %v111
    %v121 = vextract.low.u32 %v120
    %v122 = vextract.high.u32 %v120
    %v123 = vmul.u32 %v116, %v107
    %v124 = vadd.s32 %v119, %v121
    %vm125 = vc.u32 %v119, %v121
    %v126 = vadd.s32 %v122, 1
    %v127 = vsel %vm125, %v126, %v122
    %v128 = vadd.s32 %v123, %v127
    %v129 = vadd.s32 %v128, 536870912
    %v130 = vshrl.u32 %v129, 30
    %v131 = vshll.u32 %v130, 30
    %v132 = vsub.s32 %v128, %v131
    %vm133 = vcmp.lt.s32.totalorder %v132, 0
    %v134 = vsub.s32 0, %v132
    %v135 = vsel %vm133, %v134, %v132
    %v136 = vclz %v135
    %v137 = vsub.s32 %v136, 2
    %vm138 = vcmp.gt.s32.totalorder 0, %v137
    %v139 = vsel %vm138, 0, %v137
    %v140 = vsub.s32 32, %v139
    %v141 = vshll.u32 %v132, %v139
    %v142 = vshrl.u32 %v124, %v140
    %v143 = vor.u32 %v141, %v142
    %v144 = vsub.s32 4294967266, %v139
    %v145 = vadd.s32 %v144, 127
    %v146 = vshll.u32 %v145, 23
    %v147 = vor.u32 4788187, %v146
    %v148 = vand.u32 2147483647, %v147
    %v150 = vcvt.s32.f32 %v143
    %v151 = vmul.f32 %v150, %v148
    %v152 = vxor.u32 %v151, 2147483648
    %v153 = vsel %vm70, %v152, %v151
    %v154 = vsub.s32 4, %v130
    %v155 = vsel %vm70, %v154, %v130
    %v156 = vsel %vm69, %v66, %v153
    %v157 = vsel %vm69, 0, %v155
    %v158 = vcosq.f32.pop %v156
    %v159 = vsinq.f32.pop %v156
    %vm160 = vweird.f32 %v66
    %v161 = vadd.s32 %v157, 3
    %v162 = vand.u32 %v161, 3
    %vm163 = vcmp.lt.s32.totalorder %v162, 2
    %vm164 = vcmp.eq.s32.totalorder %v162, 0
    %v165 = vxor.u32 %v159, 2147483648
    %v166 = vsel %vm164, %v158, %v165
    %vm167 = vcmp.eq.s32.totalorder %v162, 2
    %v168 = vxor.u32 %v158, 2147483648
    %v169 = vsel %vm167, %v168, %v159
    %v170 = vsel %vm163, %v166, %v169
    %v171 = vsel %vm160, nan, %v170
    %v172 = vand.u32 2147483647, %v67
    %vm173 = vcmp.le.f32.partialorder %v172, 0.7853982
    %vm174 = vcmp.lt.s32.totalorder %v67, 0
    %v175 = vand.u32 %v67, 2139095040
    %v176 = vshrl.u32 %v175, 23
    %v177 = vsub.s32 %v176, 127
    %v178 = vand.u32 2147483647, %v67
    %v179 = vand.u32 %v178, 8388607
    %v180 = vor.u32 %v179, 8388608
    %v181 = vsub.s32 0, %v180
    %v182 = vadd.s32 %v177, 1
    %vm183 = vcmp.gt.s32.totalorder %v182, 0
    %v184 = vsel %vm183, %v182, 0
    %v185 = vshrl.u32 %v184, 5
    %v186 = vand.u32 %v184, 31
    %v187 = vsub.s32 32, %v186
    %v188 = vshrl.u32 683565275, %v187
    %v189 = vshll.u32 683565275, %v186
    %v190 = vshrl.u32 2475754826, %v187
    %v191 = vor.u32 %v189, %v190
    %v192 = vshll.u32 2475754826, %v186
    %v193 = vshrl.u32 2131351028, %v187
    %v194 = vor.u32 %v192, %v193
    %v195 = vshll.u32 2131351028, %v186
    %v196 = vshrl.u32 2102212464, %v187
    %v197 = vor.u32 %v195, %v196
    %v198 = vshll.u32 2102212464, %v186
    %v199 = vshrl.u32 920167782, %v187
    %v200 = vor.u32 %v198, %v199
    %v201 = vshll.u32 920167782, %v186
    %v202 = vshrl.u32 1326507024, %v187
    %v203 = vor.u32 %v201, %v202
    %vm204 = vcmp.lt.s32.totalorder %v185, 1
    %vm205 = vcmp.lt.s32.totalorder %v185, 2
    %vm206 = vcmp.lt.s32.totalorder %v185, 3
    %vm207 = vcmp.lt.s32.totalorder %v185, 4
    %v208 = vsel %vm204, %v188, %v191
    %v209 = vsel %vm207, %v197, 2102212464
    %v210 = vsel %vm206, %v194, %v209
    %v211 = vsel %vm205, %v208, %v210
    %v212 = vsel %vm204, %v191, %v194
    %v213 = vsel %vm207, %v200, 920167782
    %v214 = vsel %vm206, %v197, %v213
    %v215 = vsel %vm205, %v212, %v214
    %v216 = vsel %vm204, %v194, %v197
    %v217 = vsel %vm207, %v203, 1326507024
    %v218 = vsel %vm206, %v200, %v217
    %v219 = vsel %vm205, %v216, %v218
    %v220 = vshll.u32 %v180, 8
    %v221 = vmul.u32.u64.compose %v220, %v219
    %v222 = vextract.low.u32 %v221
    %v223 = vextract.high.u32 %v221
    %v224 = vmul.u32.u64.compose %v220, %v215
    %v225 = vextract.low.u32 %v224
    %v226 = vextract.high.u32 %v224
    %v227 = vmul.u32 %v220, %v211
    %v228 = vadd.s32 %v223, %v225
    %vm229 = vc.u32 %v223, %v225
    %v230 = vadd.s32 %v226, 1
    %v231 = vsel %vm229, %v230, %v226
    %v232 = vadd.s32 %v227, %v231
    %v233 = vadd.s32 %v232, 536870912
    %v234 = vshrl.u32 %v233, 30
    %v235 = vshll.u32 %v234, 30
    %v236 = vsub.s32 %v232, %v235
    %vm237 = vcmp.lt.s32.totalorder %v236, 0
    %v238 = vsub.s32 0, %v236
    %v239 = vsel %vm237, %v238, %v236
    %v240 = vclz %v239
    %v241 = vsub.s32 %v240, 2
    %vm242 = vcmp.gt.s32.totalorder 0, %v241
    %v243 = vsel %vm242, 0, %v241
    %v244 = vsub.s32 32, %v243
    %v245 = vshll.u32 %v236, %v243
    %v246 = vshrl.u32 %v228, %v244
    %v247 = vor.u32 %v245, %v246
    %v248 = vsub.s32 4294967266, %v243
    %v249 = vadd.s32 %v248, 127
    %v250 = vshll.u32 %v249, 23
    %v251 = vor.u32 4788187, %v250
    %v252 = vand.u32 2147483647, %v251
    %v254 = vcvt.s32.f32 %v247
    %v255 = vmul.f32 %v254, %v252
    %v256 = vxor.u32 %v255, 2147483648
    %v257 = vsel %vm174, %v256, %v255
    %v258 = vsub.s32 4, %v234
    %v259 = vsel %vm174, %v258, %v234
    %v260 = vsel %vm173, %v67, %v257
    %v261 = vsel %vm173, 0, %v259
    %v262 = vcosq.f32.pop %v260
    %v263 = vsinq.f32.pop %v260
    %vm264 = vweird.f32 %v67
    %v265 = vadd.s32 %v261, 3
    %v266 = vand.u32 %v265, 3
    %vm267 = vcmp.lt.s32.totalorder %v266, 2
    %vm268 = vcmp.eq.s32.totalorder %v266, 0
    %v269 = vxor.u32 %v263, 2147483648
    %v270 = vsel %vm268, %v262, %v269
    %vm271 = vcmp.eq.s32.totalorder %v266, 2
    %v272 = vxor.u32 %v262, 2147483648
    %v273 = vsel %vm271, %v272, %v263
    %v274 = vsel %vm267, %v270, %v273
    %v275 = vsel %vm264, nan, %v274
    %v276 = vadd.f32 %v66, 1.5707964
    %v277 = vadd.f32 %v67, 1.5707964
    %v278 = vand.u32 2147483647, %v276
    %vm279 = vcmp.le.f32.partialorder %v278, 0.7853982
    %vm280 = vcmp.lt.s32.totalorder %v276, 0
    %v281 = vand.u32 %v276, 2139095040
    %v282 = vshrl.u32 %v281, 23
    %v283 = vsub.s32 %v282, 127
    %v284 = vand.u32 2147483647, %v276
    %v285 = vand.u32 %v284, 8388607
    %v286 = vor.u32 %v285, 8388608
    %v287 = vsub.s32 0, %v286
    %v288 = vadd.s32 %v283, 1
    %vm289 = vcmp.gt.s32.totalorder %v288, 0
    %v290 = vsel %vm289, %v288, 0
    %v291 = vshrl.u32 %v290, 5
    %v292 = vand.u32 %v290, 31
    %v293 = vsub.s32 32, %v292
    %v294 = vshrl.u32 683565275, %v293
    %v295 = vshll.u32 683565275, %v292
    %v296 = vshrl.u32 2475754826, %v293
    %v297 = vor.u32 %v295, %v296
    %v298 = vshll.u32 2475754826, %v292
    %v299 = vshrl.u32 2131351028, %v293
    %v300 = vor.u32 %v298, %v299
    %v301 = vshll.u32 2131351028, %v292
    %v302 = vshrl.u32 2102212464, %v293
    %v303 = vor.u32 %v301, %v302
    %v304 = vshll.u32 2102212464, %v292
    %v305 = vshrl.u32 920167782, %v293
    %v306 = vor.u32 %v304, %v305
    %v307 = vshll.u32 920167782, %v292
    %v308 = vshrl.u32 1326507024, %v293
    %v309 = vor.u32 %v307, %v308
    %vm310 = vcmp.lt.s32.totalorder %v291, 1
    %vm311 = vcmp.lt.s32.totalorder %v291, 2
    %vm312 = vcmp.lt.s32.totalorder %v291, 3
    %vm313 = vcmp.lt.s32.totalorder %v291, 4
    %v314 = vsel %vm310, %v294, %v297
    %v315 = vsel %vm313, %v303, 2102212464
    %v316 = vsel %vm312, %v300, %v315
    %v317 = vsel %vm311, %v314, %v316
    %v318 = vsel %vm310, %v297, %v300
    %v319 = vsel %vm313, %v306, 920167782
    %v320 = vsel %vm312, %v303, %v319
    %v321 = vsel %vm311, %v318, %v320
    %v322 = vsel %vm310, %v300, %v303
    %v323 = vsel %vm313, %v309, 1326507024
    %v324 = vsel %vm312, %v306, %v323
    %v325 = vsel %vm311, %v322, %v324
    %v326 = vshll.u32 %v286, 8
    %v327 = vmul.u32.u64.compose %v326, %v325
    %v328 = vextract.low.u32 %v327
    %v329 = vextract.high.u32 %v327
    %v330 = vmul.u32.u64.compose %v326, %v321
    %v331 = vextract.low.u32 %v330
    %v332 = vextract.high.u32 %v330
    %v333 = vmul.u32 %v326, %v317
    %v334 = vadd.s32 %v329, %v331
    %vm335 = vc.u32 %v329, %v331
    %v336 = vadd.s32 %v332, 1
    %v337 = vsel %vm335, %v336, %v332
    %v338 = vadd.s32 %v333, %v337
    %v339 = vadd.s32 %v338, 536870912
    %v340 = vshrl.u32 %v339, 30
    %v341 = vshll.u32 %v340, 30
    %v342 = vsub.s32 %v338, %v341
    %vm343 = vcmp.lt.s32.totalorder %v342, 0
    %v344 = vsub.s32 0, %v342
    %v345 = vsel %vm343, %v344, %v342
    %v346 = vclz %v345
    %v347 = vsub.s32 %v346, 2
    %vm348 = vcmp.gt.s32.totalorder 0, %v347
    %v349 = vsel %vm348, 0, %v347
    %v350 = vsub.s32 32, %v349
    %v351 = vshll.u32 %v342, %v349
    %v352 = vshrl.u32 %v334, %v350
    %v353 = vor.u32 %v351, %v352
    %v354 = vsub.s32 4294967266, %v349
    %v355 = vadd.s32 %v354, 127
    %v356 = vshll.u32 %v355, 23
    %v357 = vor.u32 4788187, %v356
    %v358 = vand.u32 2147483647, %v357
    %v360 = vcvt.s32.f32 %v353
    %v361 = vmul.f32 %v360, %v358
    %v362 = vxor.u32 %v361, 2147483648
    %v363 = vsel %vm280, %v362, %v361
    %v364 = vsub.s32 4, %v340
    %v365 = vsel %vm280, %v364, %v340
    %v366 = vsel %vm279, %v276, %v363
    %v367 = vsel %vm279, 0, %v365
    %v368 = vcosq.f32.pop %v366
    %v369 = vsinq.f32.pop %v366
    %vm370 = vweird.f32 %v276
    %v371 = vadd.s32 %v367, 3
    %v372 = vand.u32 %v371, 3
    %vm373 = vcmp.lt.s32.totalorder %v372, 2
    %vm374 = vcmp.eq.s32.totalorder %v372, 0
    %v375 = vxor.u32 %v369, 2147483648
    %v376 = vsel %vm374, %v368, %v375
    %vm377 = vcmp.eq.s32.totalorder %v372, 2
    %v378 = vxor.u32 %v368, 2147483648
    %v379 = vsel %vm377, %v378, %v369
    %v380 = vsel %vm373, %v376, %v379
    %v381 = vsel %vm370, nan, %v380
    %v382 = vand.u32 2147483647, %v277
    %vm383 = vcmp.le.f32.partialorder %v382, 0.7853982
    %vm384 = vcmp.lt.s32.totalorder %v277, 0
    %v385 = vand.u32 %v277, 2139095040
    %v386 = vshrl.u32 %v385, 23
    %v387 = vsub.s32 %v386, 127
    %v388 = vand.u32 2147483647, %v277
    %v389 = vand.u32 %v388, 8388607
    %v390 = vor.u32 %v389, 8388608
    %v391 = vsub.s32 0, %v390
    %v392 = vadd.s32 %v387, 1
    %vm393 = vcmp.gt.s32.totalorder %v392, 0
    %v394 = vsel %vm393, %v392, 0
    %v395 = vshrl.u32 %v394, 5
    %v396 = vand.u32 %v394, 31
    %v397 = vsub.s32 32, %v396
    %v398 = vshrl.u32 683565275, %v397
    %v399 = vshll.u32 683565275, %v396
    %v400 = vshrl.u32 2475754826, %v397
    %v401 = vor.u32 %v399, %v400
    %v402 = vshll.u32 2475754826, %v396
    %v403 = vshrl.u32 2131351028, %v397
    %v404 = vor.u32 %v402, %v403
    %v405 = vshll.u32 2131351028, %v396
    %v406 = vshrl.u32 2102212464, %v397
    %v407 = vor.u32 %v405, %v406
    %v408 = vshll.u32 2102212464, %v396
    %v409 = vshrl.u32 920167782, %v397
    %v410 = vor.u32 %v408, %v409
    %v411 = vshll.u32 920167782, %v396
    %v412 = vshrl.u32 1326507024, %v397
    %v413 = vor.u32 %v411, %v412
    %vm414 = vcmp.lt.s32.totalorder %v395, 1
    %vm415 = vcmp.lt.s32.totalorder %v395, 2
    %vm416 = vcmp.lt.s32.totalorder %v395, 3
    %vm417 = vcmp.lt.s32.totalorder %v395, 4
    %v418 = vsel %vm414, %v398, %v401
    %v419 = vsel %vm417, %v407, 2102212464
    %v420 = vsel %vm416, %v404, %v419
    %v421 = vsel %vm415, %v418, %v420
    %v422 = vsel %vm414, %v401, %v404
    %v423 = vsel %vm417, %v410, 920167782
    %v424 = vsel %vm416, %v407, %v423
    %v425 = vsel %vm415, %v422, %v424
    %v426 = vsel %vm414, %v404, %v407
    %v427 = vsel %vm417, %v413, 1326507024
    %v428 = vsel %vm416, %v410, %v427
    %v429 = vsel %vm415, %v426, %v428
    %v430 = vshll.u32 %v390, 8
    %v431 = vmul.u32.u64.compose %v430, %v429
    %v432 = vextract.low.u32 %v431
    %v433 = vextract.high.u32 %v431
    %v434 = vmul.u32.u64.compose %v430, %v425
    %v435 = vextract.low.u32 %v434
    %v436 = vextract.high.u32 %v434
    %v437 = vmul.u32 %v430, %v421
    %v438 = vadd.s32 %v433, %v435
    %vm439 = vc.u32 %v433, %v435
    %v440 = vadd.s32 %v436, 1
    %v441 = vsel %vm439, %v440, %v436
    %v442 = vadd.s32 %v437, %v441
    %v443 = vadd.s32 %v442, 536870912
    %v444 = vshrl.u32 %v443, 30
    %v445 = vshll.u32 %v444, 30
    %v446 = vsub.s32 %v442, %v445
    %vm447 = vcmp.lt.s32.totalorder %v446, 0
    %v448 = vsub.s32 0, %v446
    %v449 = vsel %vm447, %v448, %v446
    %v450 = vclz %v449
    %v451 = vsub.s32 %v450, 2
    %vm452 = vcmp.gt.s32.totalorder 0, %v451
    %v453 = vsel %vm452, 0, %v451
    %v454 = vsub.s32 32, %v453
    %v455 = vshll.u32 %v446, %v453
    %v456 = vshrl.u32 %v438, %v454
    %v457 = vor.u32 %v455, %v456
    %v458 = vsub.s32 4294967266, %v453
    %v459 = vadd.s32 %v458, 127
    %v460 = vshll.u32 %v459, 23
    %v461 = vor.u32 4788187, %v460
    %v462 = vand.u32 2147483647, %v461
    %v464 = vcvt.s32.f32 %v457
    %v465 = vmul.f32 %v464, %v462
    %v466 = vxor.u32 %v465, 2147483648
    %v467 = vsel %vm384, %v466, %v465
    %v468 = vsub.s32 4, %v444
    %v469 = vsel %vm384, %v468, %v444
    %v470 = vsel %vm383, %v277, %v467
    %v471 = vsel %vm383, 0, %v469
    %v472 = vcosq.f32.pop %v470
    %v473 = vsinq.f32.pop %v470
    %vm474 = vweird.f32 %v277
    %v475 = vadd.s32 %v471, 3
    %v476 = vand.u32 %v475, 3
    %vm477 = vcmp.lt.s32.totalorder %v476, 2
    %vm478 = vcmp.eq.s32.totalorder %v476, 0
    %v479 = vxor.u32 %v473, 2147483648
    %v480 = vsel %vm478, %v472, %v479
    %vm481 = vcmp.eq.s32.totalorder %v476, 2
    %v482 = vxor.u32 %v472, 2147483648
    %v483 = vsel %vm481, %v482, %v473
    %v484 = vsel %vm477, %v480, %v483
    %v485 = vsel %vm474, nan, %v484
    %vm488 = vcmask 1042432
    %v489 = vrot.slane %v171, 5
    %v490 = vrot.slane %v275, 5
    %v491 = vsel %vm488, %v489, %v490
    %vm496 = vcmask 1046528
    %v497 = vrot.slane %v381, 1
    %v498 = vrot.slane %v485, 1
    %v499 = vsel %vm496, %v497, %v498
    %v503 = vsel %vm488, %v20, %v489
    %v504 = vsel %vm496, %v491, %v497
    %505 = vxpose.xlu0.b32.start [1/16] %v503, 128
    %506 = vxpose.xlu0.b32.cont [2/16] %v504, 128
    %507 = vxpose.xlu0.b32.cont [3/16] %v499, 128
    %508 = vxpose.xlu0.b32.cont [4/16] %v498, 128
    %509 = vxpose.xlu0.b32.cont [5/16] 0.0, 128
    %510 = vxpose.xlu0.b32.cont [6/16] 0.0, 128
    %511 = vxpose.xlu0.b32.cont [7/16] 0.0, 128
    %512 = vxpose.xlu0.b32.cont [8/16] 0.0, 128
    %513 = vxpose.xlu0.b32.cont [9/16] 0.0, 128
    %514 = vxpose.xlu0.b32.cont [10/16] 0.0, 128
    %515 = vxpose.xlu0.b32.cont [11/16] 0.0, 128
    %516 = vxpose.xlu0.b32.cont [12/16] 0.0, 128
    %517 = vxpose.xlu0.b32.cont [13/16] 0.0, 128
    %518 = vxpose.xlu0.b32.cont [14/16] 0.0, 128
    %519 = vxpose.xlu0.b32.cont [15/16] 0.0, 128
    %520 = vxpose.xlu0.b32.end [16/16] 0.0, 128
    %v521 = vpop.trf.xlu0
    %v522 = vpop.trf.xlu0
    %v523 = vpop.trf.xlu0
    %v524 = vpop.trf.xlu0
    %v525 = vpop.trf.xlu0
    %v526 = vpop.trf.xlu0
    %v527 = vpop.trf.xlu0
    %v528 = vpop.trf.xlu0
    %v529 = vpop.trf.xlu0
    %v530 = vpop.trf.xlu0
    %v531 = vpop.trf.xlu0
    %v532 = vpop.trf.xlu0
    %v533 = vpop.trf.xlu0
    %v534 = vpop.trf.xlu0
    %v535 = vpop.trf.xlu0
    %v536 = vpop.trf.xlu0
    %vm537 = vcmask 220160
    %538 = vst.msk [vmem:[%s1] sm:$0xff] %vm537, %v521
    %539 = vst.msk [vmem:[%s1 + $0x8] sm:$0xff] %vm537, %v522
    %540 = vst.msk [vmem:[%s1 + $0x10] sm:$0xff] %vm537, %v523
    %541 = vst.msk [vmem:[%s1 + $0x18] sm:$0xff] %vm537, %v524
    %542 = vst.msk [vmem:[%s1 + $0x20] sm:$0xff] %vm537, %v525
    %543 = vst.msk [vmem:[%s1 + $0x28] sm:$0xff] %vm537, %v526
    %544 = vst.msk [vmem:[%s1 + $0x30] sm:$0xff] %vm537, %v527
    %545 = vst.msk [vmem:[%s1 + $0x38] sm:$0xff] %vm537, %v528
    %546 = vst.msk [vmem:[%s1 + $0x40] sm:$0xff] %vm537, %v529
    %547 = vst.msk [vmem:[%s1 + $0x48] sm:$0xff] %vm537, %v530
    %548 = vst.msk [vmem:[%s1 + $0x50] sm:$0xff] %vm537, %v531
    %549 = vst.msk [vmem:[%s1 + $0x58] sm:$0xff] %vm537, %v532
    %550 = vst.msk [vmem:[%s1 + $0x60] sm:$0xff] %vm537, %v533
    %551 = vst.msk [vmem:[%s1 + $0x68] sm:$0xff] %vm537, %v534
    %552 = vst.msk [vmem:[%s1 + $0x70] sm:$0xff] %vm537, %v535
    %553 = vst.msk [vmem:[%s1 + $0x78] sm:$0xff] %vm537, %v536
    // Predicated region
    $region10: #{tpu_custom_call.1} parent=1 // pred_check
      _
    $region11: #{tpu_custom_call.1} parent=1 // pred_check_branch
      %555 = sbr.rel (0) target = $region13
    $region12: #{tpu_custom_call.1} parent=1 // pred_region
      _
    $region13: #{tpu_custom_call.1} parent=1 // pred_fallthru
      _
    // Predicated region
    $region14: #{tpu_custom_call.1} parent=1 // pred_check
      _
    $region15: #{tpu_custom_call.1} parent=1 // pred_check_branch
      %557 = sbr.rel (0) target = $region17
    $region16: #{tpu_custom_call.1} parent=1 // pred_region
      _
    $region17: #{tpu_custom_call.1} parent=1 // pred_fallthru
      _
    %558 = vsyncpa [#allocation3], 1

</llo_original>
